<compile_context>
chip_gen: v6e
topology: v6e:2x2x1
jax: 0.10.0
libtpu: 0.0.40
codegen_flags: <defaults>
</compile_context>

<pallas_src>
import jax
import jax.numpy as jnp
from jax.experimental import pallas as pl
from jax.experimental.pallas import tpu as pltpu


def _round_up(a, m):
    return (a + m - 1) // m * m


# ----------------------------- kernels ------------------------------------- #

def _linear_single_kernel(x_ref, w_ref, b_ref, o_ref):
    # Single grid step along K: whole contraction in one dot, bias folded in.
    # x_ref: (TM, F_p) f32, w_ref: (F_p, TN) bf16, b_ref: (1, TN) f32,
    # o_ref: (TM, TN) f32.
    x = x_ref[...].astype(w_ref.dtype)          # in-kernel bf16 cast (free VALU)
    o_ref[...] = b_ref[...] + jnp.dot(x, w_ref[...],
                                      preferred_element_type=jnp.float32)


def _linear_tiled_kernel(x_ref, w_ref, b_ref, o_ref):
    # General K-tiled path. o_ref's BlockSpec returns (i, j) for every k, so it
    # is VMEM-resident across the K axis and doubles as the accumulator.
    k = pl.program_id(2)

    @pl.when(k == 0)
    def _init():
        o_ref[...] = jnp.broadcast_to(b_ref[...], o_ref.shape).astype(o_ref.dtype)

    x = x_ref[...].astype(w_ref.dtype)          # in-kernel bf16 cast
    o_ref[...] += jnp.dot(x, w_ref[...], preferred_element_type=jnp.float32)


# ----------------------------- wrapper ------------------------------------- #

def prepare_params(w, b, *, compute_dtype=jnp.bfloat16):
    """One-time (model init) parameter prep: pad to lane-dense tiles, cast weight.

    w: (F, num_classes) f32   b: (num_classes,) f32
    Returns w_p: (F_p, C_p) bf16, b_p: (1, C_p) f32, with zero padding so padded
    columns never leak into the (sliced) result.
    """
    f, c = w.shape
    c_p = _round_up(c, 128)                       # lane-dense output columns
    tk = min(2048, _round_up(f, 128))             # contraction tile used by forward
    f_p = _round_up(f, tk)
    w_p = jnp.pad(w, ((0, f_p - f), (0, c_p - c))).astype(compute_dtype)
    b_p = jnp.pad(b.astype(jnp.float32), (0, c_p - c)).reshape(1, c_p)
    return w_p, b_p


def _pick_tiles(n, f_p, c_p):
    # TN: fill the 2x256 MXU on v6e/v7x when the head is wide enough; 128 otherwise.
    tn = 256 if (c_p >= 256 and c_p % 256 == 0) else 128
    tk = min(2048, f_p)                           # f_p is a multiple of tk by prepare
    tm = min(512, _round_up(n, 16))               # bf16 sublane packing -> multiple of 16
    # v7x has 2 TensorCores: keep >= 2 parallel M tiles when the batch allows it.
    if _round_up(n, tm) // tm < 2 and n >= 32:
        tm = max(16, _round_up(tm // 2, 16))
    return tm, tn, tk


def base_model_forward(x, w_p, b_p, num_classes):
    """Forward pass: preprocess (flatten) + linear head, with prepared params."""
    n = x.shape[0]
    if x.ndim > 2:                                # preprocess: x.view(x.size(0), -1)
        x = x.reshape(n, -1)
    f = x.shape[1]
    f_p, c_p = w_p.shape

    tm, tn, tk = _pick_tiles(n, f_p, c_p)
    n_p = _round_up(n, tm)

    # Only the activation is padded per call; it stays f32 (cast happens in-kernel).
    x_p = jnp.pad(x, ((0, n_p - n), (0, f_p - f)))

    gm, gn, gk = n_p // tm, c_p // tn, f_p // tk

    cost = pl.CostEstimate(
        flops=2 * n_p * f_p * c_p,
        transcendentals=0,
        bytes_accessed=int(x_p.size * 4 + w_p.size * 2 + b_p.size * 4
                           + n_p * c_p * 4),
    )

    if gk == 1:
        # Whole contraction fits one tile: single-step kernel, no K axis, no pl.when.
        out_p = pl.pallas_call(
            _linear_single_kernel,
            out_shape=jax.ShapeDtypeStruct((n_p, c_p), jnp.float32),
            grid_spec=pltpu.PrefetchScalarGridSpec(
                num_scalar_prefetch=0,
                grid=(gm, gn),
                in_specs=[
                    pl.BlockSpec((tm, f_p), lambda i, j: (i, 0)),
                    pl.BlockSpec((f_p, tn), lambda i, j: (0, j)),
                    pl.BlockSpec((1, tn), lambda i, j: (0, j)),
                ],
                out_specs=pl.BlockSpec((tm, tn), lambda i, j: (i, j)),
            ),
            compiler_params=pltpu.CompilerParams(
                dimension_semantics=("parallel", "parallel")),
            cost_estimate=cost,
        )(x_p, w_p, b_p)
    else:
        out_p = pl.pallas_call(
            _linear_tiled_kernel,
            out_shape=jax.ShapeDtypeStruct((n_p, c_p), jnp.float32),
            grid_spec=pltpu.PrefetchScalarGridSpec(
                num_scalar_prefetch=0,
                grid=(gm, gn, gk),
                in_specs=[
                    pl.BlockSpec((tm, tk), lambda i, j, k: (i, k)),
                    pl.BlockSpec((tk, tn), lambda i, j, k: (k, j)),
                    # bias: same block across K -> resident, DMA'd once per (i, j)
                    pl.BlockSpec((1, tn), lambda i, j, k: (0, j)),
                ],
                out_specs=pl.BlockSpec((tm, tn), lambda i, j, k: (i, j)),
            ),
            compiler_params=pltpu.CompilerParams(
                dimension_semantics=("parallel", "parallel", "arbitrary")),
            cost_estimate=cost,
        )(x_p, w_p, b_p)

    # Slice back to the logical (unpadded) shape.
    return out_p[:n, :num_classes]


# ------------------------------- demo -------------------------------------- #

if __name__ == "__main__":
    key = jax.random.PRNGKey(0)
    k_x, k_w, k_b = jax.random.split(key, 3)

    # Small shapes consistent with the module: NCHW image input.
    N, C, H, W = 2, 4, 16, 16
    num_classes = 10
    F = C * H * W

    x = jax.random.normal(k_x, (N, C, H, W), dtype=jnp.float32)
    # Deterministic parameter init (Kaiming-uniform-ish scale, like nn.Linear).
    bound = 1.0 / (F ** 0.5)
    w = jax.random.uniform(k_w, (F, num_classes), minval=-bound, maxval=bound,
                           dtype=jnp.float32)
    b = jax.random.uniform(k_b, (num_classes,), minval=-bound, maxval=bound,
                           dtype=jnp.float32)

    # One-time parameter prep (pad + bf16 cast hoisted out of the forward path).
    w_p, b_p = prepare_params(w, b)
    jax.block_until_ready((w_p, b_p))

    out = base_model_forward(x, w_p, b_p, num_classes)
    jax.block_until_ready(out)

    # Reference in plain JAX with the same bf16 quantization + f32 accumulation.
    x_q = x.reshape(N, -1).astype(jnp.bfloat16).astype(jnp.float32)
    w_q = w.astype(jnp.bfloat16).astype(jnp.float32)
    ref = jnp.dot(x_q, w_q, preferred_element_type=jnp.float32) + b

    assert out.shape == (N, num_classes)
    assert jnp.allclose(out, ref, atol=2e-3, rtol=2e-3), \
        float(jnp.max(jnp.abs(out - ref)))

    print("KERNEL_OK")
</pallas_src>

<mosaic_0001>
module attributes {stable_mosaic.version = 11 : i64} {
  func.func @_linear_single_kernel(%arg0: i32, %arg1: i32, %arg2: memref<16x1024xf32, #tpu.memory_space<vmem>>, %arg3: memref<1024x128xbf16, #tpu.memory_space<vmem>>, %arg4: memref<1x128xf32, #tpu.memory_space<vmem>>, %arg5: memref<16x128xf32, #tpu.memory_space<vmem>>) attributes {dimension_semantics = [#tpu.dimension_semantics<parallel>, #tpu.dimension_semantics<parallel>], iteration_bounds = array<i64: 1, 1>, scalar_prefetch = 0 : i64, scratch_operands = 0 : i64, tpu.core_type = #tpu.core_type<tc>, window_params = [{transform_indices = @transform_0, window_bounds = array<i64: 16, 1024>}, {transform_indices = @transform_1, window_bounds = array<i64: 1024, 128>}, {transform_indices = @transform_2, window_bounds = array<i64: 1, 128>}, {transform_indices = @transform_3, window_bounds = array<i64: 16, 128>}]} {
    %c0 = arith.constant 0 : index
    %c0_0 = arith.constant 0 : index
    %0 = vector.load %arg2[%c0, %c0_0] : memref<16x1024xf32, #tpu.memory_space<vmem>>, vector<16x1024xf32>
    %1 = arith.truncf %0 : vector<16x1024xf32> to vector<16x1024xbf16>
    %c0_1 = arith.constant 0 : index
    %c0_2 = arith.constant 0 : index
    %2 = vector.load %arg4[%c0_1, %c0_2] : memref<1x128xf32, #tpu.memory_space<vmem>>, vector<1x128xf32>
    %c0_3 = arith.constant 0 : index
    %c0_4 = arith.constant 0 : index
    %3 = vector.load %arg3[%c0_3, %c0_4] : memref<1024x128xbf16, #tpu.memory_space<vmem>>, vector<1024x128xbf16>
    %cst = arith.constant dense<0.000000e+00> : vector<16x128xf32>
    %4 = tpu.matmul %1, %3, %cst {dimension_numbers = #tpu.dot_dimension_numbers<[1], [0], [0], [1], [0, 0, 1, 1], [], []>} : vector<16x1024xbf16>, vector<1024x128xbf16>, vector<16x128xf32> -> vector<16x128xf32>
    %5 = vector.broadcast %2 : vector<1x128xf32> to vector<16x128xf32>
    %6 = arith.addf %5, %4 : vector<16x128xf32>
    %c0_5 = arith.constant 0 : index
    %c0_6 = arith.constant 0 : index
    %7 = vector.load %arg5[%c0_5, %c0_6] : memref<16x128xf32, #tpu.memory_space<vmem>>, vector<16x128xf32>
    tpu.vector_store %arg5[%c0_5, %c0_6], %6 {strides = array<i32>} : memref<16x128xf32, #tpu.memory_space<vmem>>, vector<16x128xf32>,
    return
  }
  func.func @transform_0(%arg0: i32, %arg1: i32) -> (i32, i32) {
    %c0_i32 = arith.constant 0 : i32
    %c0_i32_0 = arith.constant 0 : i32
    return %arg0, %c0_i32 : i32, i32
  }
  func.func @transform_1(%arg0: i32, %arg1: i32) -> (i32, i32) {
    %c0_i32 = arith.constant 0 : i32
    %c0_i32_0 = arith.constant 0 : i32
    return %c0_i32, %arg1 : i32, i32
  }
  func.func @transform_2(%arg0: i32, %arg1: i32) -> (i32, i32) {
    %c0_i32 = arith.constant 0 : i32
    %c0_i32_0 = arith.constant 0 : i32
    return %c0_i32, %arg1 : i32, i32
  }
  func.func @transform_3(%arg0: i32, %arg1: i32) -> (i32, i32) {
    %c0_i32 = arith.constant 0 : i32
    return %arg0, %arg1 : i32, i32
  }
}

</mosaic_0001>

<llo_original>
// kernel: tpu_custom_call.1
$region0: #{tpu_custom_call.1}
  #allocation0 [shape = 'u32[]', space=smem, size = 0x4, offset = 0x4, fixed_abs, tag = 'smem constant byte address 0x4 - core index']
  #allocation1 [shape = 'u32[144,128]{1,0:T(1,128)}', space=vmem, size = 0x12000, scoped, tag = 'internal scratch']
  %s0 = inlined_call_operand.hbm [shape: f32[16,1024], index: 0, kind: input, shape index: {}]
  %s1 = inlined_call_operand.hbm [shape: bf16[1024,128], index: 1, kind: input, shape index: {}]
  %s2 = inlined_call_operand.vmem [shape: f32[1,128], index: 2, kind: input, shape index: {}]
  %s3 = inlined_call_operand.hbm [shape: f32[16,128], index: 3, kind: output, shape index: {}]
  %s4 = sld [smem:[#allocation0]]
  $region30: #{tpu_custom_call.1} parent=0
    _
  %s6 = ssub.s32 1, %s4
  %s7 = scalar_select 0, %s6, %s4
  $region1: #{tpu_custom_call.1} parent=0
    #allocation2 [shape = 'u8[65536]{0}', space=vmem, size = 0x10000, scoped, tag = 'input window, operand 0, single buffered']
    #allocation3 [shape = 's32[1]{0}', space=sflag, size = 0x4, scoped, tag = 'scoped memory for tpu_custom_call.1']
    #allocation4 [shape = 's32[1]{0}', space=sflag, size = 0x4, scoped, tag = 'scoped memory for tpu_custom_call.1']
    #allocation5 [shape = 'u8[262144]{0}', space=vmem, size = 0x40000, scoped, tag = 'input window, operand 1, single buffered']
    #allocation6 [shape = 's32[1]{0}', space=sflag, size = 0x4, scoped, tag = 'scoped memory for tpu_custom_call.1']
    #allocation7 [shape = 'u8[8192]{0}', space=vmem, size = 0x2000, scoped, tag = 'output window, operand 0, single buffered']
    %8 = vsyncpa [#allocation3], 0
    %9 = vsyncpa [#allocation6], 0
    %10 = vsyncpa [#allocation4], 0
    // Predicated region
    $region2: #{tpu_custom_call.1} parent=1 // pred_check
      _
    $region3: #{tpu_custom_call.1} parent=1 // pred_check_branch
      %12 = sbr.rel (0) target = $region5
    $region4: #{tpu_custom_call.1} parent=1 // pred_region
      %s14 = ssub.s32 2048, 2048
      %15 = vsyncadd [#allocation3], %s14
      %s16 = sshll.u32 [#allocation2], 4
      %s17 = int_to_ptr.vmem [resolvable:$true] %s16
      %22 = dma.hbm_to_vmem [thread:$0]  %s0, 2048, %s17, [#allocation3], 1024, 1024, 64
    $region5: #{tpu_custom_call.1} parent=1 // pred_fallthru
      _
    // Predicated region
    $region6: #{tpu_custom_call.1} parent=1 // pred_check
      _
    $region7: #{tpu_custom_call.1} parent=1 // pred_check_branch
      %24 = sbr.rel (0) target = $region9
    $region8: #{tpu_custom_call.1} parent=1 // pred_region
      %s26 = ssub.s32 8192, 8192
      %27 = vsyncadd [#allocation6], %s26
      %s28 = sshll.u32 [#allocation5], 4
      %s29 = int_to_ptr.vmem [resolvable:$true] %s28
      %34 = dma.hbm_to_vmem [thread:$0]  %s1, 8192, %s29, [#allocation6], 64, 64, 4
    $region9: #{tpu_custom_call.1} parent=1 // pred_fallthru
      _
    // Predicated region
    $region10: #{tpu_custom_call.1} parent=1 // pred_check
      _
    $region11: #{tpu_custom_call.1} parent=1 // pred_check_branch
      %36 = sbr.rel (0) target = $region13
    $region12: #{tpu_custom_call.1} parent=1 // pred_region
      _
    $region13: #{tpu_custom_call.1} parent=1 // pred_fallthru
      _
    // Predicated region
    $region14: #{tpu_custom_call.1} parent=1 // pred_check
      _
    $region15: #{tpu_custom_call.1} parent=1 // pred_check_branch
      %38 = sbr.rel (0) target = $region17
    $region16: #{tpu_custom_call.1} parent=1 // pred_region
      %39 = dma.done [#allocation3], 2048
    $region17: #{tpu_custom_call.1} parent=1 // pred_fallthru
      _
    // Predicated region
    $region18: #{tpu_custom_call.1} parent=1 // pred_check
      _
    $region19: #{tpu_custom_call.1} parent=1 // pred_check_branch
      %41 = sbr.rel (0) target = $region21
    $region20: #{tpu_custom_call.1} parent=1 // pred_region
      %42 = dma.done [#allocation6], 8192
    $region21: #{tpu_custom_call.1} parent=1 // pred_fallthru
      _
    %v44 = vld [vmem:[#allocation2] sm:$0xff]
    %v45 = vld [vmem:[#allocation2 + $0x8] sm:$0xff]
    %v46 = vld [vmem:[#allocation2 + $0x10] sm:$0xff]
    %v47 = vld [vmem:[#allocation2 + $0x18] sm:$0xff]
    %v48 = vld [vmem:[#allocation2 + $0x20] sm:$0xff]
    %v49 = vld [vmem:[#allocation2 + $0x28] sm:$0xff]
    %v50 = vld [vmem:[#allocation2 + $0x30] sm:$0xff]
    %v51 = vld [vmem:[#allocation2 + $0x38] sm:$0xff]
    %v52 = vld [vmem:[#allocation2 + $0x40] sm:$0xff]
    %v53 = vld [vmem:[#allocation2 + $0x48] sm:$0xff]
    %v54 = vld [vmem:[#allocation2 + $0x50] sm:$0xff]
    %v55 = vld [vmem:[#allocation2 + $0x58] sm:$0xff]
    %v56 = vld [vmem:[#allocation2 + $0x60] sm:$0xff]
    %v57 = vld [vmem:[#allocation2 + $0x68] sm:$0xff]
    %v58 = vld [vmem:[#allocation2 + $0x70] sm:$0xff]
    %v59 = vld [vmem:[#allocation2 + $0x78] sm:$0xff]
    %v60 = vpack.c.bf16 %v52, %v44
    %v61 = vpack.c.bf16 %v53, %v45
    %v62 = vpack.c.bf16 %v54, %v46
    %v63 = vpack.c.bf16 %v55, %v47
    %v64 = vpack.c.bf16 %v56, %v48
    %v65 = vpack.c.bf16 %v57, %v49
    %v66 = vpack.c.bf16 %v58, %v50
    %v67 = vpack.c.bf16 %v59, %v51
    %v68 = vld [vmem:[%s2] sm:$0x1]
    %v69 = vld [vmem:[#allocation5] sm:$0xf]
    %v70 = vld [vmem:[#allocation5 + $0x4] sm:$0xf]
    %v71 = vld [vmem:[#allocation5 + $0x8] sm:$0xf]
    %v72 = vld [vmem:[#allocation5 + $0xc] sm:$0xf]
    %v73 = vld [vmem:[#allocation5 + $0x10] sm:$0xf]
    %v74 = vld [vmem:[#allocation5 + $0x14] sm:$0xf]
    %v75 = vld [vmem:[#allocation5 + $0x18] sm:$0xf]
    %v76 = vld [vmem:[#allocation5 + $0x1c] sm:$0xf]
    %v77 = vld [vmem:[#allocation5 + $0x20] sm:$0xf]
    %v78 = vld [vmem:[#allocation5 + $0x24] sm:$0xf]
    %v79 = vld [vmem:[#allocation5 + $0x28] sm:$0xf]
    %v80 = vld [vmem:[#allocation5 + $0x2c] sm:$0xf]
    %v81 = vld [vmem:[#allocation5 + $0x30] sm:$0xf]
    %v82 = vld [vmem:[#allocation5 + $0x34] sm:$0xf]
    %v83 = vld [vmem:[#allocation5 + $0x38] sm:$0xf]
    %v84 = vld [vmem:[#allocation5 + $0x3c] sm:$0xf]
    %v85 = vld [vmem:[#allocation5 + $0x40] sm:$0xf]
    %v86 = vld [vmem:[#allocation5 + $0x44] sm:$0xf]
    %v87 = vld [vmem:[#allocation5 + $0x48] sm:$0xf]
    %v88 = vld [vmem:[#allocation5 + $0x4c] sm:$0xf]
    %v89 = vld [vmem:[#allocation5 + $0x50] sm:$0xf]
    %v90 = vld [vmem:[#allocation5 + $0x54] sm:$0xf]
    %v91 = vld [vmem:[#allocation5 + $0x58] sm:$0xf]
    %v92 = vld [vmem:[#allocation5 + $0x5c] sm:$0xf]
    %v93 = vld [vmem:[#allocation5 + $0x60] sm:$0xf]
    %v94 = vld [vmem:[#allocation5 + $0x64] sm:$0xf]
    %v95 = vld [vmem:[#allocation5 + $0x68] sm:$0xf]
    %v96 = vld [vmem:[#allocation5 + $0x6c] sm:$0xf]
    %v97 = vld [vmem:[#allocation5 + $0x70] sm:$0xf]
    %v98 = vld [vmem:[#allocation5 + $0x74] sm:$0xf]
    %v99 = vld [vmem:[#allocation5 + $0x78] sm:$0xf]
    %v100 = vld [vmem:[#allocation5 + $0x7c] sm:$0xf]
    %v101 = vld [vmem:[#allocation5 + $0x80] sm:$0xf]
    %v102 = vld [vmem:[#allocation5 + $0x84] sm:$0xf]
    %v103 = vld [vmem:[#allocation5 + $0x88] sm:$0xf]
    %v104 = vld [vmem:[#allocation5 + $0x8c] sm:$0xf]
    %v105 = vld [vmem:[#allocation5 + $0x90] sm:$0xf]
    %v106 = vld [vmem:[#allocation5 + $0x94] sm:$0xf]
    %v107 = vld [vmem:[#allocation5 + $0x98] sm:$0xf]
    %v108 = vld [vmem:[#allocation5 + $0x9c] sm:$0xf]
    %v109 = vld [vmem:[#allocation5 + $0xa0] sm:$0xf]
    %v110 = vld [vmem:[#allocation5 + $0xa4] sm:$0xf]
    %v111 = vld [vmem:[#allocation5 + $0xa8] sm:$0xf]
    %v112 = vld [vmem:[#allocation5 + $0xac] sm:$0xf]
    %v113 = vld [vmem:[#allocation5 + $0xb0] sm:$0xf]
    %v114 = vld [vmem:[#allocation5 + $0xb4] sm:$0xf]
    %v115 = vld [vmem:[#allocation5 + $0xb8] sm:$0xf]
    %v116 = vld [vmem:[#allocation5 + $0xbc] sm:$0xf]
    %v117 = vld [vmem:[#allocation5 + $0xc0] sm:$0xf]
    %v118 = vld [vmem:[#allocation5 + $0xc4] sm:$0xf]
    %v119 = vld [vmem:[#allocation5 + $0xc8] sm:$0xf]
    %v120 = vld [vmem:[#allocation5 + $0xcc] sm:$0xf]
    %v121 = vld [vmem:[#allocation5 + $0xd0] sm:$0xf]
    %v122 = vld [vmem:[#allocation5 + $0xd4] sm:$0xf]
    %v123 = vld [vmem:[#allocation5 + $0xd8] sm:$0xf]
    %v124 = vld [vmem:[#allocation5 + $0xdc] sm:$0xf]
    %v125 = vld [vmem:[#allocation5 + $0xe0] sm:$0xf]
    %v126 = vld [vmem:[#allocation5 + $0xe4] sm:$0xf]
    %v127 = vld [vmem:[#allocation5 + $0xe8] sm:$0xf]
    %v128 = vld [vmem:[#allocation5 + $0xec] sm:$0xf]
    %v129 = vld [vmem:[#allocation5 + $0xf0] sm:$0xf]
    %v130 = vld [vmem:[#allocation5 + $0xf4] sm:$0xf]
    %v131 = vld [vmem:[#allocation5 + $0xf8] sm:$0xf]
    %v132 = vld [vmem:[#allocation5 + $0xfc] sm:$0xf]
    %v133 = vld [vmem:[#allocation5 + $0x100] sm:$0xf]
    %v134 = vld [vmem:[#allocation5 + $0x104] sm:$0xf]
    %v135 = vld [vmem:[#allocation5 + $0x108] sm:$0xf]
    %v136 = vld [vmem:[#allocation5 + $0x10c] sm:$0xf]
    %v137 = vld [vmem:[#allocation5 + $0x110] sm:$0xf]
    %v138 = vld [vmem:[#allocation5 + $0x114] sm:$0xf]
    %v139 = vld [vmem:[#allocation5 + $0x118] sm:$0xf]
    %v140 = vld [vmem:[#allocation5 + $0x11c] sm:$0xf]
    %v141 = vld [vmem:[#allocation5 + $0x120] sm:$0xf]
    %v142 = vld [vmem:[#allocation5 + $0x124] sm:$0xf]
    %v143 = vld [vmem:[#allocation5 + $0x128] sm:$0xf]
    %v144 = vld [vmem:[#allocation5 + $0x12c] sm:$0xf]
    %v145 = vld [vmem:[#allocation5 + $0x130] sm:$0xf]
    %v146 = vld [vmem:[#allocation5 + $0x134] sm:$0xf]
    %v147 = vld [vmem:[#allocation5 + $0x138] sm:$0xf]
    %v148 = vld [vmem:[#allocation5 + $0x13c] sm:$0xf]
    %v149 = vld [vmem:[#allocation5 + $0x140] sm:$0xf]
    %v150 = vld [vmem:[#allocation5 + $0x144] sm:$0xf]
    %v151 = vld [vmem:[#allocation5 + $0x148] sm:$0xf]
    %v152 = vld [vmem:[#allocation5 + $0x14c] sm:$0xf]
    %v153 = vld [vmem:[#allocation5 + $0x150] sm:$0xf]
    %v154 = vld [vmem:[#allocation5 + $0x154] sm:$0xf]
    %v155 = vld [vmem:[#allocation5 + $0x158] sm:$0xf]
    %v156 = vld [vmem:[#allocation5 + $0x15c] sm:$0xf]
    %v157 = vld [vmem:[#allocation5 + $0x160] sm:$0xf]
    %v158 = vld [vmem:[#allocation5 + $0x164] sm:$0xf]
    %v159 = vld [vmem:[#allocation5 + $0x168] sm:$0xf]
    %v160 = vld [vmem:[#allocation5 + $0x16c] sm:$0xf]
    %v161 = vld [vmem:[#allocation5 + $0x170] sm:$0xf]
    %v162 = vld [vmem:[#allocation5 + $0x174] sm:$0xf]
    %v163 = vld [vmem:[#allocation5 + $0x178] sm:$0xf]
    %v164 = vld [vmem:[#allocation5 + $0x17c] sm:$0xf]
    %v165 = vld [vmem:[#allocation5 + $0x180] sm:$0xf]
    %v166 = vld [vmem:[#allocation5 + $0x184] sm:$0xf]
    %v167 = vld [vmem:[#allocation5 + $0x188] sm:$0xf]
    %v168 = vld [vmem:[#allocation5 + $0x18c] sm:$0xf]
    %v169 = vld [vmem:[#allocation5 + $0x190] sm:$0xf]
    %v170 = vld [vmem:[#allocation5 + $0x194] sm:$0xf]
    %v171 = vld [vmem:[#allocation5 + $0x198] sm:$0xf]
    %v172 = vld [vmem:[#allocation5 + $0x19c] sm:$0xf]
    %v173 = vld [vmem:[#allocation5 + $0x1a0] sm:$0xf]
    %v174 = vld [vmem:[#allocation5 + $0x1a4] sm:$0xf]
    %v175 = vld [vmem:[#allocation5 + $0x1a8] sm:$0xf]
    %v176 = vld [vmem:[#allocation5 + $0x1ac] sm:$0xf]
    %v177 = vld [vmem:[#allocation5 + $0x1b0] sm:$0xf]
    %v178 = vld [vmem:[#allocation5 + $0x1b4] sm:$0xf]
    %v179 = vld [vmem:[#allocation5 + $0x1b8] sm:$0xf]
    %v180 = vld [vmem:[#allocation5 + $0x1bc] sm:$0xf]
    %v181 = vld [vmem:[#allocation5 + $0x1c0] sm:$0xf]
    %v182 = vld [vmem:[#allocation5 + $0x1c4] sm:$0xf]
    %v183 = vld [vmem:[#allocation5 + $0x1c8] sm:$0xf]
    %v184 = vld [vmem:[#allocation5 + $0x1cc] sm:$0xf]
    %v185 = vld [vmem:[#allocation5 + $0x1d0] sm:$0xf]
    %v186 = vld [vmem:[#allocation5 + $0x1d4] sm:$0xf]
    %v187 = vld [vmem:[#allocation5 + $0x1d8] sm:$0xf]
    %v188 = vld [vmem:[#allocation5 + $0x1dc] sm:$0xf]
    %v189 = vld [vmem:[#allocation5 + $0x1e0] sm:$0xf]
    %v190 = vld [vmem:[#allocation5 + $0x1e4] sm:$0xf]
    %v191 = vld [vmem:[#allocation5 + $0x1e8] sm:$0xf]
    %v192 = vld [vmem:[#allocation5 + $0x1ec] sm:$0xf]
    %v193 = vld [vmem:[#allocation5 + $0x1f0] sm:$0xf]
    %v194 = vld [vmem:[#allocation5 + $0x1f4] sm:$0xf]
    %v195 = vld [vmem:[#allocation5 + $0x1f8] sm:$0xf]
    %v196 = vld [vmem:[#allocation5 + $0x1fc] sm:$0xf]
    %v325 = vunpack.c.l.b16 %v69
    %v326 = vunpack.c.l.b16 %v70
    %v327 = vunpack.c.l.b16 %v71
    %v328 = vunpack.c.l.b16 %v72
    %v329 = vunpack.c.l.b16 %v73
    %v330 = vunpack.c.l.b16 %v74
    %v331 = vunpack.c.l.b16 %v75
    %v332 = vunpack.c.l.b16 %v76
    %v333 = vunpack.c.l.b16 %v77
    %v334 = vunpack.c.l.b16 %v78
    %v335 = vunpack.c.l.b16 %v79
    %v336 = vunpack.c.l.b16 %v80
    %v337 = vunpack.c.l.b16 %v81
    %v338 = vunpack.c.l.b16 %v82
    %v339 = vunpack.c.l.b16 %v83
    %v340 = vunpack.c.l.b16 %v84
    %v341 = vunpack.c.l.b16 %v85
    %v342 = vunpack.c.l.b16 %v86
    %v343 = vunpack.c.l.b16 %v87
    %v344 = vunpack.c.l.b16 %v88
    %v345 = vunpack.c.l.b16 %v89
    %v346 = vunpack.c.l.b16 %v90
    %v347 = vunpack.c.l.b16 %v91
    %v348 = vunpack.c.l.b16 %v92
    %v349 = vunpack.c.l.b16 %v93
    %v350 = vunpack.c.l.b16 %v94
    %v351 = vunpack.c.l.b16 %v95
    %v352 = vunpack.c.l.b16 %v96
    %v353 = vunpack.c.l.b16 %v97
    %v354 = vunpack.c.l.b16 %v98
    %v355 = vunpack.c.l.b16 %v99
    %v356 = vunpack.c.l.b16 %v100
    %v357 = vunpack.c.l.b16 %v101
    %v358 = vunpack.c.l.b16 %v102
    %v359 = vunpack.c.l.b16 %v103
    %v360 = vunpack.c.l.b16 %v104
    %v361 = vunpack.c.l.b16 %v105
    %v362 = vunpack.c.l.b16 %v106
    %v363 = vunpack.c.l.b16 %v107
    %v364 = vunpack.c.l.b16 %v108
    %v365 = vunpack.c.l.b16 %v109
    %v366 = vunpack.c.l.b16 %v110
    %v367 = vunpack.c.l.b16 %v111
    %v368 = vunpack.c.l.b16 %v112
    %v369 = vunpack.c.l.b16 %v113
    %v370 = vunpack.c.l.b16 %v114
    %v371 = vunpack.c.l.b16 %v115
    %v372 = vunpack.c.l.b16 %v116
    %v373 = vunpack.c.l.b16 %v117
    %v374 = vunpack.c.l.b16 %v118
    %v375 = vunpack.c.l.b16 %v119
    %v376 = vunpack.c.l.b16 %v120
    %v377 = vunpack.c.l.b16 %v121
    %v378 = vunpack.c.l.b16 %v122
    %v379 = vunpack.c.l.b16 %v123
    %v380 = vunpack.c.l.b16 %v124
    %v381 = vunpack.c.l.b16 %v125
    %v382 = vunpack.c.l.b16 %v126
    %v383 = vunpack.c.l.b16 %v127
    %v384 = vunpack.c.l.b16 %v128
    %v385 = vunpack.c.l.b16 %v129
    %v386 = vunpack.c.l.b16 %v130
    %v387 = vunpack.c.l.b16 %v131
    %v388 = vunpack.c.l.b16 %v132
    %v389 = vunpack.c.l.b16 %v133
    %v390 = vunpack.c.l.b16 %v134
    %v391 = vunpack.c.l.b16 %v135
    %v392 = vunpack.c.l.b16 %v136
    %v393 = vunpack.c.l.b16 %v137
    %v394 = vunpack.c.l.b16 %v138
    %v395 = vunpack.c.l.b16 %v139
    %v396 = vunpack.c.l.b16 %v140
    %v397 = vunpack.c.l.b16 %v141
    %v398 = vunpack.c.l.b16 %v142
    %v399 = vunpack.c.l.b16 %v143
    %v400 = vunpack.c.l.b16 %v144
    %v401 = vunpack.c.l.b16 %v145
    %v402 = vunpack.c.l.b16 %v146
    %v403 = vunpack.c.l.b16 %v147
    %v404 = vunpack.c.l.b16 %v148
    %v405 = vunpack.c.l.b16 %v149
    %v406 = vunpack.c.l.b16 %v150
    %v407 = vunpack.c.l.b16 %v151
    %v408 = vunpack.c.l.b16 %v152
    %v409 = vunpack.c.l.b16 %v153
    %v410 = vunpack.c.l.b16 %v154
    %v411 = vunpack.c.l.b16 %v155
    %v412 = vunpack.c.l.b16 %v156
    %v413 = vunpack.c.l.b16 %v157
    %v414 = vunpack.c.l.b16 %v158
    %v415 = vunpack.c.l.b16 %v159
    %v416 = vunpack.c.l.b16 %v160
    %v417 = vunpack.c.l.b16 %v161
    %v418 = vunpack.c.l.b16 %v162
    %v419 = vunpack.c.l.b16 %v163
    %v420 = vunpack.c.l.b16 %v164
    %v421 = vunpack.c.l.b16 %v165
    %v422 = vunpack.c.l.b16 %v166
    %v423 = vunpack.c.l.b16 %v167
    %v424 = vunpack.c.l.b16 %v168
    %v425 = vunpack.c.l.b16 %v169
    %v426 = vunpack.c.l.b16 %v170
    %v427 = vunpack.c.l.b16 %v171
    %v428 = vunpack.c.l.b16 %v172
    %v429 = vunpack.c.l.b16 %v173
    %v430 = vunpack.c.l.b16 %v174
    %v431 = vunpack.c.l.b16 %v175
    %v432 = vunpack.c.l.b16 %v176
    %v433 = vunpack.c.l.b16 %v177
    %v434 = vunpack.c.l.b16 %v178
    %v435 = vunpack.c.l.b16 %v179
    %v436 = vunpack.c.l.b16 %v180
    %v437 = vunpack.c.l.b16 %v181
    %v438 = vunpack.c.l.b16 %v182
    %v439 = vunpack.c.l.b16 %v183
    %v440 = vunpack.c.l.b16 %v184
    %v441 = vunpack.c.l.b16 %v185
    %v442 = vunpack.c.l.b16 %v186
    %v443 = vunpack.c.l.b16 %v187
    %v444 = vunpack.c.l.b16 %v188
    %v445 = vunpack.c.l.b16 %v189
    %v446 = vunpack.c.l.b16 %v190
    %v447 = vunpack.c.l.b16 %v191
    %v448 = vunpack.c.l.b16 %v192
    %v449 = vunpack.c.l.b16 %v193
    %v450 = vunpack.c.l.b16 %v194
    %v451 = vunpack.c.l.b16 %v195
    %v452 = vunpack.c.l.b16 %v196
    %v453 = vpack.c.b16 %v326, %v325
    %v454 = vpack.c.b16 %v328, %v327
    %v455 = vpack.c.b16 %v330, %v329
    %v456 = vpack.c.b16 %v332, %v331
    %v457 = vpack.c.b16 %v334, %v333
    %v458 = vpack.c.b16 %v336, %v335
    %v459 = vpack.c.b16 %v338, %v337
    %v460 = vpack.c.b16 %v340, %v339
    %v461 = vpack.c.b16 %v342, %v341
    %v462 = vpack.c.b16 %v344, %v343
    %v463 = vpack.c.b16 %v346, %v345
    %v464 = vpack.c.b16 %v348, %v347
    %v465 = vpack.c.b16 %v350, %v349
    %v466 = vpack.c.b16 %v352, %v351
    %v467 = vpack.c.b16 %v354, %v353
    %v468 = vpack.c.b16 %v356, %v355
    %v469 = vpack.c.b16 %v358, %v357
    %v470 = vpack.c.b16 %v360, %v359
    %v471 = vpack.c.b16 %v362, %v361
    %v472 = vpack.c.b16 %v364, %v363
    %v473 = vpack.c.b16 %v366, %v365
    %v474 = vpack.c.b16 %v368, %v367
    %v475 = vpack.c.b16 %v370, %v369
    %v476 = vpack.c.b16 %v372, %v371
    %v477 = vpack.c.b16 %v374, %v373
    %v478 = vpack.c.b16 %v376, %v375
    %v479 = vpack.c.b16 %v378, %v377
    %v480 = vpack.c.b16 %v380, %v379
    %v481 = vpack.c.b16 %v382, %v381
    %v482 = vpack.c.b16 %v384, %v383
    %v483 = vpack.c.b16 %v386, %v385
    %v484 = vpack.c.b16 %v388, %v387
    %v485 = vpack.c.b16 %v390, %v389
    %v486 = vpack.c.b16 %v392, %v391
    %v487 = vpack.c.b16 %v394, %v393
    %v488 = vpack.c.b16 %v396, %v395
    %v489 = vpack.c.b16 %v398, %v397
    %v490 = vpack.c.b16 %v400, %v399
    %v491 = vpack.c.b16 %v402, %v401
    %v492 = vpack.c.b16 %v404, %v403
    %v493 = vpack.c.b16 %v406, %v405
    %v494 = vpack.c.b16 %v408, %v407
    %v495 = vpack.c.b16 %v410, %v409
    %v496 = vpack.c.b16 %v412, %v411
    %v497 = vpack.c.b16 %v414, %v413
    %v498 = vpack.c.b16 %v416, %v415
    %v499 = vpack.c.b16 %v418, %v417
    %v500 = vpack.c.b16 %v420, %v419
    %v501 = vpack.c.b16 %v422, %v421
    %v502 = vpack.c.b16 %v424, %v423
    %v503 = vpack.c.b16 %v426, %v425
    %v504 = vpack.c.b16 %v428, %v427
    %v505 = vpack.c.b16 %v430, %v429
    %v506 = vpack.c.b16 %v432, %v431
    %v507 = vpack.c.b16 %v434, %v433
    %v508 = vpack.c.b16 %v436, %v435
    %v509 = vpack.c.b16 %v438, %v437
    %v510 = vpack.c.b16 %v440, %v439
    %v511 = vpack.c.b16 %v442, %v441
    %v512 = vpack.c.b16 %v444, %v443
    %v513 = vpack.c.b16 %v446, %v445
    %v514 = vpack.c.b16 %v448, %v447
    %v515 = vpack.c.b16 %v450, %v449
    %v516 = vpack.c.b16 %v452, %v451
    %581 = vmatprep.subr.bf16.mxu0 0
    %582 = vmatpush1.bf16.msra.mxu0 %v460
    %583 = vmatprep.subr.bf16.mxu0 0
    %584 = vmatpush1.bf16.msra.mxu0 %v459
    %585 = vmatprep.subr.bf16.mxu0 0
    %586 = vmatpush1.bf16.msra.mxu0 %v458
    %587 = vmatprep.subr.bf16.mxu0 0
    %588 = vmatpush1.bf16.msra.mxu0 %v457
    %589 = vmatprep.subr.bf16.mxu0 0
    %590 = vmatpush1.bf16.msra.mxu0 %v456
    %591 = vmatprep.subr.bf16.mxu0 0
    %592 = vmatpush1.bf16.msra.mxu0 %v455
    %593 = vmatprep.subr.bf16.mxu0 0
    %594 = vmatpush1.bf16.msra.mxu0 %v454
    %595 = vmatprep.subr.bf16.mxu0 0
    %596 = vmatpush1.bf16.msra.mxu0 %v453
    %597 = vmatprep.subr.bf16.mxu0 0
    %598 = vmatpush2.bf16.msra.mxu0 %v468
    %599 = vmatprep.subr.bf16.mxu0 0
    %600 = vmatpush2.bf16.msra.mxu0 %v467
    %601 = vmatprep.subr.bf16.mxu0 0
    %602 = vmatpush2.bf16.msra.mxu0 %v466
    %603 = vmatprep.subr.bf16.mxu0 0
    %604 = vmatpush2.bf16.msra.mxu0 %v465
    %605 = vmatprep.subr.bf16.mxu0 0
    %606 = vmatpush2.bf16.msra.mxu0 %v464
    %607 = vmatprep.subr.bf16.mxu0 0
    %608 = vmatpush2.bf16.msra.mxu0 %v463
    %609 = vmatprep.subr.bf16.mxu0 0
    %610 = vmatpush2.bf16.msra.mxu0 %v462
    %611 = vmatprep.subr.bf16.mxu0 0
    %612 = vmatpush2.bf16.msra.mxu0 %v461
    %613 = vmatprep.mubr.bf16.mxu0 %v61
    %614 = vmatmul.mubr.bf16.gmra.mxu0 %v60
    %v615 = vpop.f32.mrf.mxu0
    %v616 = vadd.f32 0.0, %v615
    %v617 = vpop.f32.mrf.mxu0
    %v618 = vpop.f32.mrf.mxu0
    %v619 = vadd.f32 0.0, %v618
    %v620 = vpop.f32.mrf.mxu0
    %621 = vdwg.mxu0
    %622 = vmatprep.subr.bf16.mxu0 0
    %623 = vmatpush1.bf16.msra.mxu0 %v476
    %624 = vmatprep.subr.bf16.mxu0 0
    %625 = vmatpush1.bf16.msra.mxu0 %v475
    %626 = vmatprep.subr.bf16.mxu0 0
    %627 = vmatpush1.bf16.msra.mxu0 %v474
    %628 = vmatprep.subr.bf16.mxu0 0
    %629 = vmatpush1.bf16.msra.mxu0 %v473
    %630 = vmatprep.subr.bf16.mxu0 0
    %631 = vmatpush1.bf16.msra.mxu0 %v472
    %632 = vmatprep.subr.bf16.mxu0 0
    %633 = vmatpush1.bf16.msra.mxu0 %v471
    %634 = vmatprep.subr.bf16.mxu0 0
    %635 = vmatpush1.bf16.msra.mxu0 %v470
    %636 = vmatprep.subr.bf16.mxu0 0
    %637 = vmatpush1.bf16.msra.mxu0 %v469
    %638 = vmatprep.subr.bf16.mxu0 0
    %639 = vmatpush2.bf16.msra.mxu0 %v484
    %640 = vmatprep.subr.bf16.mxu0 0
    %641 = vmatpush2.bf16.msra.mxu0 %v483
    %642 = vmatprep.subr.bf16.mxu0 0
    %643 = vmatpush2.bf16.msra.mxu0 %v482
    %644 = vmatprep.subr.bf16.mxu0 0
    %645 = vmatpush2.bf16.msra.mxu0 %v481
    %646 = vmatprep.subr.bf16.mxu0 0
    %647 = vmatpush2.bf16.msra.mxu0 %v480
    %648 = vmatprep.subr.bf16.mxu0 0
    %649 = vmatpush2.bf16.msra.mxu0 %v479
    %650 = vmatprep.subr.bf16.mxu0 0
    %651 = vmatpush2.bf16.msra.mxu0 %v478
    %652 = vmatprep.subr.bf16.mxu0 0
    %653 = vmatpush2.bf16.msra.mxu0 %v477
    %654 = vmatprep.mubr.bf16.mxu0 %v63
    %655 = vmatmul.mubr.bf16.gmra.mxu0 %v62
    %v656 = vpop.f32.mrf.mxu0
    %v657 = vadd.f32 %v616, %v656
    %v658 = vpop.f32.mrf.mxu0
    %v659 = vpop.f32.mrf.mxu0
    %v660 = vadd.f32 %v619, %v659
    %v661 = vpop.f32.mrf.mxu0
    %662 = vdwg.mxu0
    %663 = vmatprep.subr.bf16.mxu0 0
    %664 = vmatpush1.bf16.msra.mxu0 %v492
    %665 = vmatprep.subr.bf16.mxu0 0
    %666 = vmatpush1.bf16.msra.mxu0 %v491
    %667 = vmatprep.subr.bf16.mxu0 0
    %668 = vmatpush1.bf16.msra.mxu0 %v490
    %669 = vmatprep.subr.bf16.mxu0 0
    %670 = vmatpush1.bf16.msra.mxu0 %v489
    %671 = vmatprep.subr.bf16.mxu0 0
    %672 = vmatpush1.bf16.msra.mxu0 %v488
    %673 = vmatprep.subr.bf16.mxu0 0
    %674 = vmatpush1.bf16.msra.mxu0 %v487
    %675 = vmatprep.subr.bf16.mxu0 0
    %676 = vmatpush1.bf16.msra.mxu0 %v486
    %677 = vmatprep.subr.bf16.mxu0 0
    %678 = vmatpush1.bf16.msra.mxu0 %v485
    %679 = vmatprep.subr.bf16.mxu0 0
    %680 = vmatpush2.bf16.msra.mxu0 %v500
    %681 = vmatprep.subr.bf16.mxu0 0
    %682 = vmatpush2.bf16.msra.mxu0 %v499
    %683 = vmatprep.subr.bf16.mxu0 0
    %684 = vmatpush2.bf16.msra.mxu0 %v498
    %685 = vmatprep.subr.bf16.mxu0 0
    %686 = vmatpush2.bf16.msra.mxu0 %v497
    %687 = vmatprep.subr.bf16.mxu0 0
    %688 = vmatpush2.bf16.msra.mxu0 %v496
    %689 = vmatprep.subr.bf16.mxu0 0
    %690 = vmatpush2.bf16.msra.mxu0 %v495
    %691 = vmatprep.subr.bf16.mxu0 0
    %692 = vmatpush2.bf16.msra.mxu0 %v494
    %693 = vmatprep.subr.bf16.mxu0 0
    %694 = vmatpush2.bf16.msra.mxu0 %v493
    %695 = vmatprep.mubr.bf16.mxu0 %v65
    %696 = vmatmul.mubr.bf16.gmra.mxu0 %v64
    %v697 = vpop.f32.mrf.mxu0
    %v698 = vadd.f32 %v657, %v697
    %v699 = vpop.f32.mrf.mxu0
    %v700 = vpop.f32.mrf.mxu0
    %v701 = vadd.f32 %v660, %v700
    %v702 = vpop.f32.mrf.mxu0
    %703 = vdwg.mxu0
    %704 = vmatprep.subr.bf16.mxu0 0
    %705 = vmatpush1.bf16.msra.mxu0 %v508
    %706 = vmatprep.subr.bf16.mxu0 0
    %707 = vmatpush1.bf16.msra.mxu0 %v507
    %708 = vmatprep.subr.bf16.mxu0 0
    %709 = vmatpush1.bf16.msra.mxu0 %v506
    %710 = vmatprep.subr.bf16.mxu0 0
    %711 = vmatpush1.bf16.msra.mxu0 %v505
    %712 = vmatprep.subr.bf16.mxu0 0
    %713 = vmatpush1.bf16.msra.mxu0 %v504
    %714 = vmatprep.subr.bf16.mxu0 0
    %715 = vmatpush1.bf16.msra.mxu0 %v503
    %716 = vmatprep.subr.bf16.mxu0 0
    %717 = vmatpush1.bf16.msra.mxu0 %v502
    %718 = vmatprep.subr.bf16.mxu0 0
    %719 = vmatpush1.bf16.msra.mxu0 %v501
    %720 = vmatprep.subr.bf16.mxu0 0
    %721 = vmatpush2.bf16.msra.mxu0 %v516
    %722 = vmatprep.subr.bf16.mxu0 0
    %723 = vmatpush2.bf16.msra.mxu0 %v515
    %724 = vmatprep.subr.bf16.mxu0 0
    %725 = vmatpush2.bf16.msra.mxu0 %v514
    %726 = vmatprep.subr.bf16.mxu0 0
    %727 = vmatpush2.bf16.msra.mxu0 %v513
    %728 = vmatprep.subr.bf16.mxu0 0
    %729 = vmatpush2.bf16.msra.mxu0 %v512
    %730 = vmatprep.subr.bf16.mxu0 0
    %731 = vmatpush2.bf16.msra.mxu0 %v511
    %732 = vmatprep.subr.bf16.mxu0 0
    %733 = vmatpush2.bf16.msra.mxu0 %v510
    %734 = vmatprep.subr.bf16.mxu0 0
    %735 = vmatpush2.bf16.msra.mxu0 %v509
    %736 = vmatprep.mubr.bf16.mxu0 %v67
    %737 = vmatmul.mubr.bf16.gmra.mxu0 %v66
    %v738 = vpop.f32.mrf.mxu0
    %v739 = vadd.f32 %v698, %v738
    %v740 = vpop.f32.mrf.mxu0
    %v741 = vpop.f32.mrf.mxu0
    %v742 = vadd.f32 %v701, %v741
    %v743 = vpop.f32.mrf.mxu0
    %744 = vdwg.mxu0
    %v746 = vlaneseq
    %v747 = vshrl.u32 %v746, 7
    %v748 = vsub.s32 0, %v747
    %v749 = vrot.slane %v68, %v748
    %v751 = vadd.f32 %v749, %v739
    %v752 = vadd.f32 %v749, %v742
    %753 = vst [vmem:[#allocation7] sm:$0xff] %v751
    %754 = vst [vmem:[#allocation7 + $0x8] sm:$0xff] %v752
    // Predicated region
    $region22: #{tpu_custom_call.1} parent=1 // pred_check
      _
    $region23: #{tpu_custom_call.1} parent=1 // pred_check_branch
      %756 = sbr.rel (0) target = $region25
    $region24: #{tpu_custom_call.1} parent=1 // pred_region
      %s758 = ssub.s32 256, 256
      %759 = vsyncadd [#allocation4], %s758
      %s760 = sshll.u32 [#allocation7], 4
      %s761 = int_to_ptr.vmem [resolvable:$true] %s760
      %766 = dma.vmem_to_hbm [thread:$0]  %s761, 256, %s3, [#allocation4], 128, 128, 8
    $region25: #{tpu_custom_call.1} parent=1 // pred_fallthru
      _
    // Predicated region
    $region26: #{tpu_custom_call.1} parent=1 // pred_check
      _
    $region27: #{tpu_custom_call.1} parent=1 // pred_check_branch
      %768 = sbr.rel (0) target = $region29
    $region28: #{tpu_custom_call.1} parent=1 // pred_region
      %769 = dma.done [#allocation4], 256
    $region29: #{tpu_custom_call.1} parent=1 // pred_fallthru
      _
    %770 = vsyncpa [#allocation3], 1
    %771 = vsyncpa [#allocation6], 1
    %772 = vsyncpa [#allocation4], 1

</llo_original>
